<compile_context>
chip_gen: v5e
topology: v5e:2x2
jax: 0.10.0
libtpu: 0.0.40
codegen_flags: <defaults>
</compile_context>

<pallas_src>
import functools
import random

import jax
import jax.numpy as jnp
from jax.experimental import pallas as pl
from jax.experimental.pallas import tpu as pltpu

EPS = 1e-6
_VMEM_LIMIT_BYTES = 32 * 1024 * 1024   # safe on v5e/v6e (128 MiB) and v7x (64 MiB)
_BLOCK_BUDGET_BYTES = 4 * 1024 * 1024  # target size of one (1, Ct, HW) x-block


def _pick_channel_tile(C, HW, itemsize, budget=_BLOCK_BUDGET_BYTES):
    """Largest channel tile (divisor of C, multiple of 8) whose x-block fits budget."""
    if C * HW * itemsize <= budget or C % 8 != 0:
        return C
    for ct in range(C, 7, -8):
        if C % ct == 0 and ct * HW * itemsize <= budget:
            return ct
    return 8


def _stats_kernel(x_ref, mu_ref, sig_ref, *, hw):
    # x_ref: (1, Ct, HW) block of x; outputs: (1, Ct, 1) blocks of mu / sig.
    x = x_ref[0].astype(jnp.float32)                                  # (Ct, HW)
    mu = jnp.mean(x, axis=1, keepdims=True)                           # (Ct, 1)
    # Centered two-pass unbiased variance (matches torch.var default) -- kept
    # over the one-pass E[x^2]-E[x]^2 form to avoid catastrophic cancellation.
    var = jnp.sum((x - mu) ** 2, axis=1, keepdims=True) / (hw - 1)
    mu_ref[0] = mu
    sig_ref[0] = jnp.sqrt(var + EPS)


def _apply_kernel(perm_ref, lmda_ref, x_ref, mu_ref, sig_ref, mu2_ref, sig2_ref,
                  o_ref):
    # perm_ref is only consumed by the index_maps (block gather of perm'd stats).
    del perm_ref
    b = pl.program_id(0)
    lam = lmda_ref[b]

    mu = mu_ref[0]      # (Ct, 1) f32, stats of x[b]
    sig = sig_ref[0]
    mu2 = mu2_ref[0]    # (Ct, 1) f32, stats of x[perm[b]]
    sig2 = sig2_ref[0]

    mu_mix = mu * lam + mu2 * (1.0 - lam)
    sig_mix = sig * lam + sig2 * (1.0 - lam)

    # Fused affine: ((x - mu)/sig) * sig_mix + mu_mix == x * a + c.
    # Exact per-channel divide (length-Ct vector, negligible) to hold 1e-5 tol.
    a = sig_mix / sig
    c = mu_mix - mu * a

    x = x_ref[0].astype(jnp.float32)                                  # (Ct, HW)
    o_ref[0] = (x * a + c).astype(o_ref.dtype)


def _compute_stats(xr, ct):
    """Pass 1: per-(sample, channel) mu and sig, each shaped (B, C, 1) f32."""
    B, C, HW = xr.shape
    n_ct = C // ct
    itemsize = jnp.dtype(xr.dtype).itemsize
    kernel = functools.partial(_stats_kernel, hw=HW)
    return pl.pallas_call(
        kernel,
        out_shape=(jax.ShapeDtypeStruct((B, C, 1), jnp.float32),
                   jax.ShapeDtypeStruct((B, C, 1), jnp.float32)),
        grid=(B, n_ct),
        in_specs=[pl.BlockSpec((1, ct, HW), lambda b, c: (b, c, 0))],
        out_specs=(pl.BlockSpec((1, ct, 1), lambda b, c: (b, c, 0)),
                   pl.BlockSpec((1, ct, 1), lambda b, c: (b, c, 0))),
        compiler_params=pltpu.CompilerParams(
            dimension_semantics=("parallel", "parallel"),
            vmem_limit_bytes=_VMEM_LIMIT_BYTES),
        cost_estimate=pl.CostEstimate(
            flops=3 * B * C * HW,
            transcendentals=B * C,
            bytes_accessed=B * C * HW * itemsize + 2 * B * C * 4),
    )(xr)


def mixstyle_forward(x, perm, lmda):
    """MixStyle forward.  x: (B, C, H, W) NCHW; perm: (B,) int32; lmda: (B,) f32."""
    B, C, H, W = x.shape
    HW = H * W
    # TODO(synk): when H*W is not a multiple of 128, pad the lane dim (with
    # masked stats) so stores are unmasked lane-dense vst; the test shapes
    # (and typical CNN feature maps used with MixStyle) are already aligned.
    xr = x.reshape(B, C, HW)
    itemsize = jnp.dtype(xr.dtype).itemsize
    ct = _pick_channel_tile(C, HW, itemsize)
    n_ct = C // ct

    mu, sig = _compute_stats(xr, ct)

    x_spec = pl.BlockSpec((1, ct, HW), lambda b, c, perm, lmda: (b, c, 0))
    stat_own = pl.BlockSpec((1, ct, 1), lambda b, c, perm, lmda: (b, c, 0))
    stat_perm = pl.BlockSpec((1, ct, 1), lambda b, c, perm, lmda: (perm[b], c, 0))

    out = pl.pallas_call(
        _apply_kernel,
        out_shape=jax.ShapeDtypeStruct((B, C, HW), x.dtype),
        grid_spec=pltpu.PrefetchScalarGridSpec(
            num_scalar_prefetch=2,
            grid=(B, n_ct),
            in_specs=[x_spec, stat_own, stat_own, stat_perm, stat_perm],
            out_specs=pl.BlockSpec((1, ct, HW),
                                   lambda b, c, perm, lmda: (b, c, 0)),
        ),
        compiler_params=pltpu.CompilerParams(
            dimension_semantics=("parallel", "parallel"),
            vmem_limit_bytes=_VMEM_LIMIT_BYTES),
        cost_estimate=pl.CostEstimate(
            flops=2 * B * C * HW,
            transcendentals=0,
            bytes_accessed=2 * B * C * HW * itemsize + 4 * B * C * 4),
    )(perm, lmda, xr, mu, sig, mu, sig)

    return out.reshape(B, C, H, W)


def mixstyle(x, key, p=0.5, alpha=0.1, training=True, activated=True):
    """Full MixStyle module semantics (gating + sampling are host-side glue)."""
    if not training or not activated:
        return x
    # Host-side p-gate via Python RNG (matches the reference's random.random()
    # and avoids a device->host sync that would stall the dispatch pipeline).
    if random.random() > p:
        return x
    k_beta, k_perm = jax.random.split(key, 2)
    B = x.shape[0]
    lmda = jax.random.beta(k_beta, alpha, alpha, shape=(B,)).astype(jnp.float32)
    perm = jax.random.permutation(k_perm, B).astype(jnp.int32)
    return mixstyle_forward(x, perm, lmda)


def _reference(x, perm, lmda):
    """Plain-JAX reference mirroring the PyTorch math (for verification)."""
    B, C, H, W = x.shape
    mu = jnp.mean(x, axis=(2, 3), keepdims=True)
    var = jnp.var(x, axis=(2, 3), keepdims=True, ddof=1)  # unbiased, like torch
    sig = jnp.sqrt(var + EPS)
    x_normed = (x - mu) / sig
    lam = lmda.reshape(B, 1, 1, 1)
    mu2, sig2 = mu[perm], sig[perm]
    mu_mix = mu * lam + mu2 * (1.0 - lam)
    sig_mix = sig * lam + sig2 * (1.0 - lam)
    return x_normed * sig_mix + mu_mix


if __name__ == "__main__":
    key = jax.random.PRNGKey(0)
    kx, kb, kp = jax.random.split(key, 3)

    B, C, H, W = 2, 4, 16, 16
    x = jax.random.normal(kx, (B, C, H, W), dtype=jnp.float32)
    lmda = jax.random.beta(kb, 0.1, 0.1, shape=(B,)).astype(jnp.float32)
    perm = jax.random.permutation(kp, B).astype(jnp.int32)

    out = mixstyle_forward(x, perm, lmda)
    out = jax.block_until_ready(out)

    ref = _reference(x, perm, lmda)
    assert out.shape == x.shape and out.dtype == x.dtype
    assert jnp.allclose(out, ref, atol=1e-5, rtol=1e-5)

    print("KERNEL_OK")
</pallas_src>

<mosaic_0001>
module attributes {stable_mosaic.version = 11 : i64} {
  func.func @_stats_kernel(%arg0: i32, %arg1: i32, %arg2: memref<1x4x256xf32, #tpu.memory_space<vmem>>, %arg3: memref<1x4x1xf32, #tpu.memory_space<vmem>>, %arg4: memref<1x4x1xf32, #tpu.memory_space<vmem>>) attributes {dimension_semantics = [#tpu.dimension_semantics<parallel>, #tpu.dimension_semantics<parallel>], iteration_bounds = array<i64: 2, 1>, scalar_prefetch = 0 : i64, scratch_operands = 0 : i64, tpu.core_type = #tpu.core_type<tc>, window_params = [{transform_indices = @transform_0, window_bounds = array<i64: 1, 4, 256>}, {transform_indices = @transform_1, window_bounds = array<i64: 1, 4, 1>}, {transform_indices = @transform_2, window_bounds = array<i64: 1, 4, 1>}]} {
    %c0 = arith.constant 0 : index
    %c0_0 = arith.constant 0 : index
    %c0_1 = arith.constant 0 : index
    %0 = vector.load %arg2[%c0, %c0_0, %c0_1] : memref<1x4x256xf32, #tpu.memory_space<vmem>>, vector<1x4x256xf32>
    %1 = vector.shape_cast %0 : vector<1x4x256xf32> to vector<4x256xf32>
    %cst = arith.constant dense<0.000000e+00> : vector<4xf32>
    %2 = vector.multi_reduction <add>, %1, %cst [1] : vector<4x256xf32> to vector<4xf32>
    %3 = vector.shape_cast %2 : vector<4xf32> to vector<4x1xf32>
    %cst_2 = arith.constant 2.560000e+02 : f32
    %4 = vector.broadcast %cst_2 : f32 to vector<4x1xf32>
    %5 = arith.divf %3, %4 : vector<4x1xf32>
    %6 = vector.broadcast %5 : vector<4x1xf32> to vector<4x256xf32>
    %7 = arith.subf %1, %6 : vector<4x256xf32>
    %8 = arith.mulf %7, %7 : vector<4x256xf32>
    %cst_3 = arith.constant dense<0.000000e+00> : vector<4xf32>
    %9 = vector.multi_reduction <add>, %8, %cst_3 [1] : vector<4x256xf32> to vector<4xf32>
    %10 = vector.shape_cast %9 : vector<4xf32> to vector<4x1xf32>
    %cst_4 = arith.constant 2.550000e+02 : f32
    %11 = vector.broadcast %cst_4 : f32 to vector<4x1xf32>
    %12 = arith.divf %10, %11 : vector<4x1xf32>
    %c0_5 = arith.constant 0 : index
    %c0_6 = arith.constant 0 : index
    %c0_7 = arith.constant 0 : index
    %13 = vector.load %arg3[%c0_5, %c0_6, %c0_7] : memref<1x4x1xf32, #tpu.memory_space<vmem>>, vector<1x4x1xf32>
    %14 = vector.shape_cast %13 : vector<1x4x1xf32> to vector<4x1xf32>
    %15 = vector.shape_cast %5 : vector<4x1xf32> to vector<1x4x1xf32>
    tpu.vector_store %arg3[%c0_5, %c0_6, %c0_7], %15 {strides = array<i32>} : memref<1x4x1xf32, #tpu.memory_space<vmem>>, vector<1x4x1xf32>,
    %cst_8 = arith.constant 9.99999997E-7 : f32
    %16 = vector.broadcast %cst_8 : f32 to vector<4x1xf32>
    %17 = arith.addf %12, %16 : vector<4x1xf32>
    %18 = math.sqrt %17 : vector<4x1xf32>
    %c0_9 = arith.constant 0 : index
    %c0_10 = arith.constant 0 : index
    %c0_11 = arith.constant 0 : index
    %19 = vector.load %arg4[%c0_9, %c0_10, %c0_11] : memref<1x4x1xf32, #tpu.memory_space<vmem>>, vector<1x4x1xf32>
    %20 = vector.shape_cast %19 : vector<1x4x1xf32> to vector<4x1xf32>
    %21 = vector.shape_cast %18 : vector<4x1xf32> to vector<1x4x1xf32>
    tpu.vector_store %arg4[%c0_9, %c0_10, %c0_11], %21 {strides = array<i32>} : memref<1x4x1xf32, #tpu.memory_space<vmem>>, vector<1x4x1xf32>,
    return
  }
  func.func @transform_0(%arg0: i32, %arg1: i32) -> (i32, i32, i32) {
    %c0_i32 = arith.constant 0 : i32
    %c0_i32_0 = arith.constant 0 : i32
    return %arg0, %arg1, %c0_i32 : i32, i32, i32
  }
  func.func @transform_1(%arg0: i32, %arg1: i32) -> (i32, i32, i32) {
    %c0_i32 = arith.constant 0 : i32
    %c0_i32_0 = arith.constant 0 : i32
    return %arg0, %arg1, %c0_i32 : i32, i32, i32
  }
  func.func @transform_2(%arg0: i32, %arg1: i32) -> (i32, i32, i32) {
    %c0_i32 = arith.constant 0 : i32
    %c0_i32_0 = arith.constant 0 : i32
    return %arg0, %arg1, %c0_i32 : i32, i32, i32
  }
}

</mosaic_0001>

<llo_original>
// kernel: tpu_custom_call.1
$region0: #{tpu_custom_call.1}
  #allocation0 [shape = 'u32[]', space=smem, size = 0x4, offset = 0x4, fixed_abs, tag = 'smem constant byte address 0x4 - core index']
  #allocation1 [shape = 'u32[72,128]{1,0:T(1,128)}', space=vmem, size = 0x9000, scoped, tag = 'internal scratch']
  %s0 = inlined_call_operand.hbm [shape: f32[2,4,256], index: 0, kind: input, shape index: {}]
  %s1 = inlined_call_operand.vmem [shape: f32[2,4,1], index: 1, kind: output, shape index: {0}]
  %s2 = inlined_call_operand.vmem [shape: f32[2,4,1], index: 2, kind: output, shape index: {1}]
  %3 = xla_tuple %s1, %s2
  %s4 = sld [smem:[#allocation0]]
  $region49: #{tpu_custom_call.1} parent=0
    _
  %s6 = ssub.s32 1, %s4
  %s7 = scalar_select 0, %s6, %s4
  $region1: #{tpu_custom_call.1} parent=0
    #allocation2 [shape = 'u8[8192]{0}', space=vmem, size = 0x2000, scoped, tag = 'input window, operand 0']
    #allocation3 [shape = 's32[2]{0}', space=sflag, size = 0x8, scoped, tag = 'scoped memory for tpu_custom_call.1']
    %8 = vsyncpa [#allocation3], 0
    %s9 = scalar_lea.sflag [#allocation3], 1
    %10 = vsyncpa %s9, 0
    loop: start=0, step=1, limit=4
    $region2: #{tpu_custom_call.1} parent=1 // loop_pre_header
      _
    $region3: #{tpu_custom_call.1} parent=1 // loop_header
      %s12 = sphi 0, %s16
      %p13 = scmp.ge.s32.totalorder %s12, 4
      %s19 = sphi 0, %s31
      %s20 = sphi 0, %s27
      %s21 = sphi 0, %s19
      %s22 = sphi 0, %s20
      %s23 = sphi 0, %s21
      %s24 = sphi 0, %s22
      %s36 = sphi 0, %s38
      %s39 = sphi 0, %s36
      %s40 = sphi 0, %s39
      %s56 = sphi 0, %s40
      %s64 = sphi 0, %s66
      %s67 = sphi 0, %s64
      %s68 = sphi 0, %s67
      %s84 = sphi 0, %s68
      %s92 = sphi 0, %s94
      %s95 = sphi 0, %s92
      %s96 = sphi 0, %s95
      %s112 = sphi 0, %s96
    $region4: #{tpu_custom_call.1} parent=1 // loop_header_branch
      %15 = sbr.rel (%p13) target = $region8
    $region5: #{tpu_custom_call.1} parent=1 // loop_body
      %s17 = ssub.s32 %s12, 1
      %s18 = ssub.s32 %s12, 2
      %s25 = sadd.s32 1, %s20
      %p26 = scmp.ge.s32.totalorder %s25, 1
      %s27 = scalar_select %p26, 0, %s25
      %s28 = sadd.s32 1, %s19
      %s29 = scalar_select %p26, %s28, %s19
      %p30 = scmp.ge.s32.totalorder %s29, 2
      %s31 = scalar_select %p30, 0, %s29
      %s32 = ssub.s32 %s19, %s31
      %s33 = ssub.s32 %s20, %s27
      %s34 = sor.u32 %s32, %s33
      %p35 = scmp.eq.s32.totalorder %s34, 0
      %s37 = sadd.s32 %s36, 1
      %s38 = scalar_select %p35, %s36, %s37
      %p41 = pneg %p35
      %p42 = scmp.eq.s32.totalorder %s12, 1
      %p43 = por %p41, %p42
      %p44 = scmp.ne.s32.totalorder %s36, %s39
      %p45 = scmp.eq.s32.totalorder %s12, 0
      %p46 = por %p44, %p45
      %p47 = scmp.ne.s32.totalorder %s36, %s39
      %p48 = scmp.eq.s32.totalorder %s17, 1
      %p49 = por %p47, %p48
      %p50 = scmp.ne.s32.totalorder %s39, %s40
      %p51 = scmp.eq.s32.totalorder %s17, 0
      %p52 = por %p50, %p51
      %p53 = scmp.ne.s32.totalorder %s39, %s40
      %p54 = scmp.eq.s32.totalorder %s18, 1
      %p55 = por %p53, %p54
      %p57 = scmp.ne.s32.totalorder %s40, %s56
      %p58 = scmp.eq.s32.totalorder %s18, 0
      %p59 = por %p57, %p58
      %s60 = ssub.s32 %s19, %s31
      %s61 = ssub.s32 %s20, %s27
      %s62 = sor.u32 %s60, %s61
      %p63 = scmp.eq.s32.totalorder %s62, 0
      %s65 = sadd.s32 %s64, 1
      %s66 = scalar_select %p63, %s64, %s65
      %p69 = pneg %p63
      %p70 = scmp.eq.s32.totalorder %s12, 1
      %p71 = por %p69, %p70
      %p72 = scmp.ne.s32.totalorder %s64, %s67
      %p73 = scmp.eq.s32.totalorder %s12, 0
      %p74 = por %p72, %p73
      %p75 = scmp.ne.s32.totalorder %s64, %s67
      %p76 = scmp.eq.s32.totalorder %s17, 1
      %p77 = por %p75, %p76
      %p78 = scmp.ne.s32.totalorder %s67, %s68
      %p79 = scmp.eq.s32.totalorder %s17, 0
      %p80 = por %p78, %p79
      %p81 = scmp.ne.s32.totalorder %s67, %s68
      %p82 = scmp.eq.s32.totalorder %s18, 1
      %p83 = por %p81, %p82
      %p85 = scmp.ne.s32.totalorder %s68, %s84
      %p86 = scmp.eq.s32.totalorder %s18, 0
      %p87 = por %p85, %p86
      %s88 = ssub.s32 %s19, %s31
      %s89 = ssub.s32 %s20, %s27
      %s90 = sor.u32 %s88, %s89
      %p91 = scmp.eq.s32.totalorder %s90, 0
      %s93 = sadd.s32 %s92, 1
      %s94 = scalar_select %p91, %s92, %s93
      %p97 = pneg %p91
      %p98 = scmp.eq.s32.totalorder %s12, 1
      %p99 = por %p97, %p98
      %p100 = scmp.ne.s32.totalorder %s92, %s95
      %p101 = scmp.eq.s32.totalorder %s12, 0
      %p102 = por %p100, %p101
      %p103 = scmp.ne.s32.totalorder %s92, %s95
      %p104 = scmp.eq.s32.totalorder %s17, 1
      %p105 = por %p103, %p104
      %p106 = scmp.ne.s32.totalorder %s95, %s96
      %p107 = scmp.eq.s32.totalorder %s17, 0
      %p108 = por %p106, %p107
      %p109 = scmp.ne.s32.totalorder %s95, %s96
      %p110 = scmp.eq.s32.totalorder %s18, 1
      %p111 = por %p109, %p110
      %p113 = scmp.ne.s32.totalorder %s96, %s112
      %p114 = scmp.eq.s32.totalorder %s18, 0
      %p115 = por %p113, %p114
      %p116 = scmp.le.s32.totalorder 1, %s12
      %p117 = scmp.lt.s32.totalorder %s12, 3
      %p118 = pnand %p116, %p117
      %p119 = pneg %p118
      // Predicated region
      $region9: #{tpu_custom_call.1} parent=5 // pred_check
        _
      $region10: #{tpu_custom_call.1} parent=5 // pred_check_branch
        %121 = sbr.rel (%p118) target = $region12
      $region11: #{tpu_custom_call.1} parent=5 // pred_region
        %s122 = ssub.s32 %s12, 1
      $region12: #{tpu_custom_call.1} parent=5 // pred_fallthru
        _
      %p123 = scmp.lt.s32.totalorder %s12, 2
      // Predicated region
      $region13: #{tpu_custom_call.1} parent=5 // pred_check
        %p124 = pneg %p123
      $region14: #{tpu_custom_call.1} parent=5 // pred_check_branch
        %126 = sbr.rel (%p124) target = $region16
      $region15: #{tpu_custom_call.1} parent=5 // pred_region
        // Predicated region
        $region17: #{tpu_custom_call.1} parent=15 // pred_check
          %p127 = pneg %p46
        $region18: #{tpu_custom_call.1} parent=15 // pred_check_branch
          %129 = sbr.rel (%p127) target = $region20
        $region19: #{tpu_custom_call.1} parent=15 // pred_region
          %s130 = sand.u32 %s36, 1
          %s131 = scalar_lea.sflag [#allocation3], %s130
          %s132 = sand.u32 %s36, 1
          %s133 = smul.addr %s132, 8
          %s134 = scalar_lea.vmem [#allocation2], %s133
          %136 = vsyncadd %s131, 0
          %s137 = smul.addr %s20, 2
          %s138 = smul.addr %s19, 2
          %s139 = sadd.s32 %s137, %s138
          %s140 = smul.addr %s139, 4
          %s141 = scalar_lea.hbm %s0, %s140
          %s143 = sshll.u32 %s141, 4
          %s144 = int_to_ptr.hbm [resolvable:$true] %s143
          %s145 = sshll.u32 %s134, 4
          %s146 = int_to_ptr.vmem [resolvable:$true] %s145
          %148 = dma.hbm_to_vmem [thread:$0]  %s144, 128, %s146, %s131
        $region20: #{tpu_custom_call.1} parent=15 // pred_fallthru
          _
      $region16: #{tpu_custom_call.1} parent=5 // pred_fallthru
        _
      %p149 = scmp.le.s32.totalorder 1, %s12
      %p150 = scmp.lt.s32.totalorder %s12, 3
      %p151 = pnand %p149, %p150
      %p152 = pneg %p151
      // Predicated region
      $region21: #{tpu_custom_call.1} parent=5 // pred_check
        _
      $region22: #{tpu_custom_call.1} parent=5 // pred_check_branch
        %154 = sbr.rel (%p151) target = $region24
      $region23: #{tpu_custom_call.1} parent=5 // pred_region
        %s155 = ssub.s32 %s12, 1
        %s156 = sand.u32 %s39, 1
        %s157 = scalar_lea.sflag [#allocation3], %s156
        %s158 = sand.u32 %s39, 1
        %s159 = smul.addr %s158, 8
        %s160 = scalar_lea.vmem [#allocation2], %s159
        // Predicated region
        $region25: #{tpu_custom_call.1} parent=23 // pred_check
          %p161 = pneg %p52
        $region26: #{tpu_custom_call.1} parent=23 // pred_check_branch
          %163 = sbr.rel (%p161) target = $region28
        $region27: #{tpu_custom_call.1} parent=23 // pred_region
          %165 = dma.done %s157, 128
        $region28: #{tpu_custom_call.1} parent=23 // pred_fallthru
          _
        %s166 = sand.u32 %s39, 1
        %s167 = scalar_lea.sflag [#allocation3], %s166
        %s168 = sand.u32 %s39, 1
        %s169 = smul.addr %s168, 8
        %s170 = scalar_lea.vmem [#allocation2], %s169
        %p171 = pneg %p52
        %p172 = pneg %p49
        %p173 = pneg %p80
        %p174 = pneg %p77
        %p175 = scmp.lt.s32.totalorder %s21, 1
        %s176 = scalar_select %p175, %s21, 1
        %p177 = scmp.lt.s32.totalorder %s22, 0
        %s178 = scalar_select %p177, %s22, 0
        %s179 = sadd.s32 %s178, %s176
        %s180 = smul.addr %s179, 4
        %s181 = scalar_lea.vmem %s1, %s180
        %p182 = pneg %p108
        %p183 = pneg %p105
        %p184 = scmp.lt.s32.totalorder %s21, 1
        %s185 = scalar_select %p184, %s21, 1
        %p186 = scmp.lt.s32.totalorder %s22, 0
        %s187 = scalar_select %p186, %s22, 0
        %s188 = sadd.s32 %s187, %s185
        %s189 = smul.addr %s188, 4
        %s190 = scalar_lea.vmem %s2, %s189
        %p191 = scmp.lt.s32.totalorder %s21, 1
        %s192 = scalar_select %p191, %s21, 1
        %p193 = scmp.lt.s32.totalorder %s22, 0
        %s194 = scalar_select %p193, %s22, 0
        %s195 = sadd.s32 %s194, %s192
        %s196 = smul.addr %s195, 4
        %s197 = scalar_lea.vmem %s1, %s196
        %p198 = scmp.lt.s32.totalorder %s21, 1
        %s199 = scalar_select %p198, %s21, 1
        %p200 = scmp.lt.s32.totalorder %s22, 0
        %s201 = scalar_select %p200, %s22, 0
        %s202 = sadd.s32 %s201, %s199
        %s203 = smul.addr %s202, 4
        %s204 = scalar_lea.vmem %s2, %s203
        %v205 = vld [vmem:[%s160] sm:$0xff]
        %207 = vst [vmem:[#allocation1] ss:$2 sm:$0xff] %v205
        %v208 = vld.sshfl [vmem:[#allocation1] sm:$0xff pattern:$0x75316420]
        %v209 = vld.sshfl [vmem:[#allocation1 + $0x8] sm:$0xff pattern:$0x75316420]
        %vm212 = vcmask 1043456
        %v213 = vsel %vm212, %v208, 0.0
        %v214 = vsel %vm212, %v209, 0.0
        %v215 = vadd.f32 %v213, %v214
        %216 = vadd.xlane.f32.xlu0 %v215
        %v217 = vpop.xlane.xlu0 %216
        %v218 = vrcp.pop 256.0
        %v219 = vmul.f32 256.0, %v218
        %v220 = vsub.f32 1.0, %v219
        %v221 = vmul.f32 %v218, %v220
        %v222 = vadd.f32 %v218, %v221
        %vm223 = vweird.f32 %v218
        %v224 = vsel %vm223, %v218, %v222
        %v225 = vmul.f32 %v217, %v224
        %v228 = vunpack.c.l.s4 839922192
        %v229 = vunpack.c.0.s8 %v228
        %v230 = vperm.slane %v225, %v229
        %v232 = vsub.f32 %v205, %v230
        %v233 = vmul.f32 %v232, %v232
        %235 = vst [vmem:[#allocation1] ss:$2 sm:$0xff] %v233
        %v236 = vld.sshfl [vmem:[#allocation1] sm:$0xff pattern:$0x75316420]
        %v237 = vld.sshfl [vmem:[#allocation1 + $0x8] sm:$0xff pattern:$0x75316420]
        %v240 = vsel %vm212, %v236, 0.0
        %v241 = vsel %vm212, %v237, 0.0
        %v242 = vadd.f32 %v240, %v241
        %243 = vadd.xlane.f32.xlu0 %v242
        %v244 = vpop.xlane.xlu0 %243
        %v245 = vrcp.pop 255.0
        %v246 = vmul.f32 255.0, %v245
        %v247 = vsub.f32 1.0, %v246
        %v248 = vmul.f32 %v245, %v247
        %v249 = vadd.f32 %v245, %v248
        %vm250 = vweird.f32 %v245
        %v251 = vsel %vm250, %v245, %v249
        %v252 = vmul.f32 %v244, %v251
        %vm253 = vcmask 3072
        %254 = vst.msk [vmem:[%s197] sm:$0xf] %vm253, %v225
        %v255 = vadd.f32 %v252, 1e-06
        %v256 = vrsqrt.pop %v255
        %v257 = vmul.f32 %v256, %v255
        %v258 = vmul.f32 %v257, %v256
        %v259 = vmul.f32 0.5, %v258
        %v260 = vsub.f32 1.5, %v259
        %v261 = vmul.f32 %v256, %v260
        %v262 = vmul.f32 %v255, %v261
        %vm263 = vcmp.eq.f32.partialorder %v255, inf
        %v264 = vsel %vm263, %v255, %v262
        %vm265 = vcmp.eq.f32.partialorder %v255, 0.0
        %v266 = vand.u32 %v255, 2147483648
        %v267 = vsel %vm265, %v266, %v264
        %268 = vst.msk [vmem:[%s204] sm:$0xf] %vm253, %v267
        %p269 = scmp.lt.s32.totalorder %s21, 1
        %s270 = scalar_select %p269, %s21, 1
        %p271 = scmp.lt.s32.totalorder %s22, 0
        %s272 = scalar_select %p271, %s22, 0
        %s273 = sadd.s32 %s272, %s270
        %s274 = smul.addr %s273, 4
        %s275 = scalar_lea.vmem %s1, %s274
        %p276 = scmp.lt.s32.totalorder %s21, 1
        %s277 = scalar_select %p276, %s21, 1
        %p278 = scmp.lt.s32.totalorder %s22, 0
        %s279 = scalar_select %p278, %s22, 0
        %s280 = sadd.s32 %s279, %s277
        %s281 = smul.addr %s280, 4
        %s282 = scalar_lea.vmem %s2, %s281
        // Predicated region
        $region29: #{tpu_custom_call.1} parent=23 // pred_check
          %p283 = pneg %p77
        $region30: #{tpu_custom_call.1} parent=23 // pred_check_branch
          %285 = sbr.rel (%p283) target = $region32
        $region31: #{tpu_custom_call.1} parent=23 // pred_region
          _
        $region32: #{tpu_custom_call.1} parent=23 // pred_fallthru
          _
        // Predicated region
        $region33: #{tpu_custom_call.1} parent=23 // pred_check
          %p286 = pneg %p105
        $region34: #{tpu_custom_call.1} parent=23 // pred_check_branch
          %288 = sbr.rel (%p286) target = $region36
        $region35: #{tpu_custom_call.1} parent=23 // pred_region
          _
        $region36: #{tpu_custom_call.1} parent=23 // pred_fallthru
          _
      $region24: #{tpu_custom_call.1} parent=5 // pred_fallthru
        _
      %p289 = scmp.le.s32.totalorder 2, %s12
      // Predicated region
      $region37: #{tpu_custom_call.1} parent=5 // pred_check
        %p290 = pneg %p289
      $region38: #{tpu_custom_call.1} parent=5 // pred_check_branch
        %292 = sbr.rel (%p290) target = $region40
      $region39: #{tpu_custom_call.1} parent=5 // pred_region
        %s293 = ssub.s32 %s12, 2
        // Predicated region
        $region41: #{tpu_custom_call.1} parent=39 // pred_check
          %p294 = pneg %p83
        $region42: #{tpu_custom_call.1} parent=39 // pred_check_branch
          %296 = sbr.rel (%p294) target = $region44
        $region43: #{tpu_custom_call.1} parent=39 // pred_region
          %p297 = scmp.lt.s32.totalorder %s23, 1
          %s298 = scalar_select %p297, %s23, 1
          %p299 = scmp.lt.s32.totalorder %s24, 0
          %s300 = scalar_select %p299, %s24, 0
          %s301 = sadd.s32 %s300, %s298
          %s302 = smul.addr %s301, 4
          %s303 = scalar_lea.vmem %s1, %s302
        $region44: #{tpu_custom_call.1} parent=39 // pred_fallthru
          _
        // Predicated region
        $region45: #{tpu_custom_call.1} parent=39 // pred_check
          %p304 = pneg %p111
        $region46: #{tpu_custom_call.1} parent=39 // pred_check_branch
          %306 = sbr.rel (%p304) target = $region48
        $region47: #{tpu_custom_call.1} parent=39 // pred_region
          %p307 = scmp.lt.s32.totalorder %s23, 1
          %s308 = scalar_select %p307, %s23, 1
          %p309 = scmp.lt.s32.totalorder %s24, 0
          %s310 = scalar_select %p309, %s24, 0
          %s311 = sadd.s32 %s310, %s308
          %s312 = smul.addr %s311, 4
          %s313 = scalar_lea.vmem %s2, %s312
        $region48: #{tpu_custom_call.1} parent=39 // pred_fallthru
          _
      $region40: #{tpu_custom_call.1} parent=5 // pred_fallthru
        _
    $region6: #{tpu_custom_call.1} parent=1 // loop_footer
      %s16 = sadd.s32 1, %s12
    $region7: #{tpu_custom_call.1} parent=1 // loop_footer_branch
      %11 = sbr.rel target = $region3
    $region8: #{tpu_custom_call.1} parent=1 // loop_exit
      _
    %314 = vsyncpa [#allocation3], 1
    %s315 = scalar_lea.sflag [#allocation3], 1
    %316 = vsyncpa %s315, 1

</llo_original>
